<compile_context>
chip_gen: v5e
topology: v5e:2x2
jax: 0.10.0
libtpu: 0.0.40
codegen_flags: <defaults>
</compile_context>

<pallas_src>
import jax
import jax.numpy as jnp
from jax.experimental import pallas as pl
from jax.experimental.pallas import tpu as pltpu

# (out_features, in_features) per layer, PyTorch nn.Linear convention.
_LAYER_DIMS = ((14, 29), (7, 14), (3, 7), (7, 3), (14, 7), (29, 14))
_RELU_LAYERS = (0, 1, 3, 4)   # ReLU after encoder layers 1,2 and decoder layers 1,2
_PAD = 32                     # padded weight slab size
_D_IN = 29


# ---------------------------------------------------------------------------
# Kernel: whole autoencoder forward for one (features=29, batch_tile) tile.
# ---------------------------------------------------------------------------
def _ae_kernel(x_ref, wp_ref, bp_ref, o_ref):
    # x_ref : (29, bt)        feature-major, batch on lanes
    # wp_ref: (6, 32, 32)     zero-padded weights, layer l at wp[l, :out, :in]
    # bp_ref: (32, 6)         zero-padded biases, layer l in column l
    h = x_ref[...].astype(jnp.float32)
    wp = wp_ref[...]
    bp = bp_ref[...]
    for l, (dout, din) in enumerate(_LAYER_DIMS):
        w = wp[l, :dout, :din]              # static slice of the packed weights
        b = bp[:dout, l:l + 1]              # (dout, 1) broadcasts over batch lanes
        h = jnp.dot(w, h, preferred_element_type=jnp.float32) + b
        if l in _RELU_LAYERS:
            h = jnp.maximum(h, 0.0)
    o_ref[...] = jnp.tanh(h).astype(o_ref.dtype)


# ---------------------------------------------------------------------------
# Wrapper
# ---------------------------------------------------------------------------
def pack_params(params):
    """params: list of 6 (W, b), W=(out,in) as in nn.Linear, b=(out,).
    Returns (wp, bp): zero-padded packed weight / bias blocks."""
    wp = jnp.zeros((len(_LAYER_DIMS), _PAD, _PAD), jnp.float32)
    bp = jnp.zeros((_PAD, len(_LAYER_DIMS)), jnp.float32)
    for l, (w, b) in enumerate(params):
        dout, din = _LAYER_DIMS[l]
        assert w.shape == (dout, din) and b.shape == (dout,)
        wp = wp.at[l, :dout, :din].set(w.astype(jnp.float32))
        bp = bp.at[:dout, l].set(b.astype(jnp.float32))
    return wp, bp


def fraud_ae_forward(x, wp, bp, *, batch_tile=512):
    """x: (B, 29) in f32 or bf16. Returns (B, 29) in x.dtype."""
    B, D = x.shape
    assert D == _D_IN
    bt = max(128, (int(batch_tile) // 128) * 128)   # lane-dense tile (multiple of 128)
    grid_n = pl.cdiv(B, bt)
    b_pad = grid_n * bt

    # Layout plumbing outside the kernel: feature-major (29, B) + batch padding.
    xt = jnp.transpose(x)
    if b_pad != B:
        xt = jnp.pad(xt, ((0, 0), (0, b_pad - B)))

    out_t = pl.pallas_call(
        _ae_kernel,
        out_shape=jax.ShapeDtypeStruct((D, b_pad), x.dtype),
        grid_spec=pltpu.PrefetchScalarGridSpec(
            num_scalar_prefetch=0,
            grid=(grid_n,),
            in_specs=[
                pl.BlockSpec((D, bt), lambda i: (0, i)),       # activations: batch on lanes
                pl.BlockSpec(wp.shape, lambda i: (0, 0, 0)),   # packed weights, DMA'd once
                pl.BlockSpec(bp.shape, lambda i: (0, 0)),      # packed biases, DMA'd once
            ],
            out_specs=pl.BlockSpec((D, bt), lambda i: (0, i)),
        ),
        compiler_params=pltpu.CompilerParams(
            dimension_semantics=("parallel",),
        ),
    )(xt, wp, bp)

    return jnp.transpose(out_t)[:B, :]


# ---------------------------------------------------------------------------
# Deterministic parameter init (mirrors nn.Linear default U(-1/sqrt(fan_in), +))
# and a pure-JAX reference forward.
# ---------------------------------------------------------------------------
def init_params(key):
    params = []
    for (fan_out, fan_in) in _LAYER_DIMS:
        key, kw, kb = jax.random.split(key, 3)
        bound = 1.0 / jnp.sqrt(jnp.float32(fan_in))
        w = jax.random.uniform(kw, (fan_out, fan_in), jnp.float32, -bound, bound)
        b = jax.random.uniform(kb, (fan_out,), jnp.float32, -bound, bound)
        params.append((w, b))
    return params


def reference_forward(x, params):
    h = x
    for l, (w, b) in enumerate(params):
        h = h @ w.T + b
        if l in _RELU_LAYERS:
            h = jnp.maximum(h, 0.0)
    return jnp.tanh(h)


if __name__ == "__main__":
    key = jax.random.PRNGKey(0)
    kp, kx = jax.random.split(key)
    params = init_params(kp)
    wp, bp = pack_params(params)

    B = 256                                   # small test batch; padded/tiled internally
    x = jax.random.normal(kx, (B, _D_IN), jnp.float32)

    # f32 I/O path (grid of 2 tiles -> exercises multi-step pipeline / 2-TC sharding)
    out = fraud_ae_forward(x, wp, bp, batch_tile=128)
    out = jax.block_until_ready(out)
    ref = reference_forward(x, params)
    assert out.shape == (B, _D_IN)
    assert jnp.allclose(out, ref, atol=1e-4, rtol=1e-4)

    # bf16 HBM I/O path (memory-bound win on v6e/v7x); looser tolerance is expected.
    out_bf16 = fraud_ae_forward(x.astype(jnp.bfloat16), wp, bp, batch_tile=128)
    out_bf16 = jax.block_until_ready(out_bf16)
    assert out_bf16.dtype == jnp.bfloat16
    assert jnp.allclose(out_bf16.astype(jnp.float32), ref, atol=1e-1)

    # Odd batch size (not a multiple of the tile) is handled by padding in the wrapper.
    x_odd = x[:200]
    out_odd = jax.block_until_ready(fraud_ae_forward(x_odd, wp, bp, batch_tile=128))
    assert out_odd.shape == (200, _D_IN)
    assert jnp.allclose(out_odd, ref[:200], atol=1e-4, rtol=1e-4)

    print("KERNEL_OK")
</pallas_src>

<mosaic_0001>
module attributes {stable_mosaic.version = 11 : i64} {
  func.func @_ae_kernel(%arg0: i32, %arg1: memref<29x128xf32, #tpu.memory_space<vmem>>, %arg2: memref<6x32x32xf32, #tpu.memory_space<vmem>>, %arg3: memref<32x6xf32, #tpu.memory_space<vmem>>, %arg4: memref<29x128xf32, #tpu.memory_space<vmem>>) attributes {dimension_semantics = [#tpu.dimension_semantics<parallel>], iteration_bounds = array<i64: 2>, scalar_prefetch = 0 : i64, scratch_operands = 0 : i64, tpu.core_type = #tpu.core_type<tc>, window_params = [{transform_indices = @transform_0, window_bounds = array<i64: 29, 128>}, {pipeline_mode = #tpu.pipeline_mode<synchronous>, transform_indices = @transform_1, window_bounds = array<i64: 6, 32, 32>}, {pipeline_mode = #tpu.pipeline_mode<synchronous>, transform_indices = @transform_2, window_bounds = array<i64: 32, 6>}, {transform_indices = @transform_3, window_bounds = array<i64: 29, 128>}]} {
    %c0 = arith.constant 0 : index
    %c0_0 = arith.constant 0 : index
    %0 = vector.load %arg1[%c0, %c0_0] : memref<29x128xf32, #tpu.memory_space<vmem>>, vector<29x128xf32>
    %c0_1 = arith.constant 0 : index
    %c0_2 = arith.constant 0 : index
    %c0_3 = arith.constant 0 : index
    %1 = vector.load %arg2[%c0_1, %c0_2, %c0_3] : memref<6x32x32xf32, #tpu.memory_space<vmem>>, vector<6x32x32xf32>
    %c0_4 = arith.constant 0 : index
    %c0_5 = arith.constant 0 : index
    %2 = vector.load %arg3[%c0_4, %c0_5] : memref<32x6xf32, #tpu.memory_space<vmem>>, vector<32x6xf32>
    %3 = vector.extract_strided_slice %1 {offsets = [0, 0, 0], sizes = [1, 14, 29], strides = [1, 1, 1]} : vector<6x32x32xf32> to vector<1x14x29xf32>
    %4 = vector.shape_cast %3 : vector<1x14x29xf32> to vector<14x29xf32>
    %5 = vector.extract_strided_slice %2 {offsets = [0, 0], sizes = [14, 1], strides = [1, 1]} : vector<32x6xf32> to vector<14x1xf32>
    %cst = arith.constant dense<0.000000e+00> : vector<14x128xf32>
    %6 = tpu.matmul %4, %0, %cst {dimension_numbers = #tpu.dot_dimension_numbers<[1], [0], [0], [1], [0, 0, 1, 1], [], []>} : vector<14x29xf32>, vector<29x128xf32>, vector<14x128xf32> -> vector<14x128xf32>
    %7 = vector.broadcast %5 : vector<14x1xf32> to vector<14x128xf32>
    %8 = arith.addf %6, %7 : vector<14x128xf32>
    %cst_6 = arith.constant 0.000000e+00 : f32
    %9 = vector.broadcast %cst_6 : f32 to vector<14x128xf32>
    %10 = arith.maximumf %8, %9 : vector<14x128xf32>
    %11 = vector.extract_strided_slice %1 {offsets = [1, 0, 0], sizes = [1, 7, 14], strides = [1, 1, 1]} : vector<6x32x32xf32> to vector<1x7x14xf32>
    %12 = vector.shape_cast %11 : vector<1x7x14xf32> to vector<7x14xf32>
    %13 = vector.extract_strided_slice %2 {offsets = [0, 1], sizes = [7, 1], strides = [1, 1]} : vector<32x6xf32> to vector<7x1xf32>
    %cst_7 = arith.constant dense<0.000000e+00> : vector<7x128xf32>
    %14 = tpu.matmul %12, %10, %cst_7 {dimension_numbers = #tpu.dot_dimension_numbers<[1], [0], [0], [1], [0, 0, 1, 1], [], []>} : vector<7x14xf32>, vector<14x128xf32>, vector<7x128xf32> -> vector<7x128xf32>
    %15 = vector.broadcast %13 : vector<7x1xf32> to vector<7x128xf32>
    %16 = arith.addf %14, %15 : vector<7x128xf32>
    %cst_8 = arith.constant 0.000000e+00 : f32
    %17 = vector.broadcast %cst_8 : f32 to vector<7x128xf32>
    %18 = arith.maximumf %16, %17 : vector<7x128xf32>
    %19 = vector.extract_strided_slice %1 {offsets = [2, 0, 0], sizes = [1, 3, 7], strides = [1, 1, 1]} : vector<6x32x32xf32> to vector<1x3x7xf32>
    %20 = vector.shape_cast %19 : vector<1x3x7xf32> to vector<3x7xf32>
    %21 = vector.extract_strided_slice %2 {offsets = [0, 2], sizes = [3, 1], strides = [1, 1]} : vector<32x6xf32> to vector<3x1xf32>
    %cst_9 = arith.constant dense<0.000000e+00> : vector<3x128xf32>
    %22 = tpu.matmul %20, %18, %cst_9 {dimension_numbers = #tpu.dot_dimension_numbers<[1], [0], [0], [1], [0, 0, 1, 1], [], []>} : vector<3x7xf32>, vector<7x128xf32>, vector<3x128xf32> -> vector<3x128xf32>
    %23 = vector.broadcast %21 : vector<3x1xf32> to vector<3x128xf32>
    %24 = arith.addf %22, %23 : vector<3x128xf32>
    %25 = vector.extract_strided_slice %1 {offsets = [3, 0, 0], sizes = [1, 7, 3], strides = [1, 1, 1]} : vector<6x32x32xf32> to vector<1x7x3xf32>
    %26 = vector.shape_cast %25 : vector<1x7x3xf32> to vector<7x3xf32>
    %27 = vector.extract_strided_slice %2 {offsets = [0, 3], sizes = [7, 1], strides = [1, 1]} : vector<32x6xf32> to vector<7x1xf32>
    %cst_10 = arith.constant dense<0.000000e+00> : vector<7x128xf32>
    %28 = tpu.matmul %26, %24, %cst_10 {dimension_numbers = #tpu.dot_dimension_numbers<[1], [0], [0], [1], [0, 0, 1, 1], [], []>} : vector<7x3xf32>, vector<3x128xf32>, vector<7x128xf32> -> vector<7x128xf32>
    %29 = vector.broadcast %27 : vector<7x1xf32> to vector<7x128xf32>
    %30 = arith.addf %28, %29 : vector<7x128xf32>
    %cst_11 = arith.constant 0.000000e+00 : f32
    %31 = vector.broadcast %cst_11 : f32 to vector<7x128xf32>
    %32 = arith.maximumf %30, %31 : vector<7x128xf32>
    %33 = vector.extract_strided_slice %1 {offsets = [4, 0, 0], sizes = [1, 14, 7], strides = [1, 1, 1]} : vector<6x32x32xf32> to vector<1x14x7xf32>
    %34 = vector.shape_cast %33 : vector<1x14x7xf32> to vector<14x7xf32>
    %35 = vector.extract_strided_slice %2 {offsets = [0, 4], sizes = [14, 1], strides = [1, 1]} : vector<32x6xf32> to vector<14x1xf32>
    %cst_12 = arith.constant dense<0.000000e+00> : vector<14x128xf32>
    %36 = tpu.matmul %34, %32, %cst_12 {dimension_numbers = #tpu.dot_dimension_numbers<[1], [0], [0], [1], [0, 0, 1, 1], [], []>} : vector<14x7xf32>, vector<7x128xf32>, vector<14x128xf32> -> vector<14x128xf32>
    %37 = vector.broadcast %35 : vector<14x1xf32> to vector<14x128xf32>
    %38 = arith.addf %36, %37 : vector<14x128xf32>
    %cst_13 = arith.constant 0.000000e+00 : f32
    %39 = vector.broadcast %cst_13 : f32 to vector<14x128xf32>
    %40 = arith.maximumf %38, %39 : vector<14x128xf32>
    %41 = vector.extract_strided_slice %1 {offsets = [5, 0, 0], sizes = [1, 29, 14], strides = [1, 1, 1]} : vector<6x32x32xf32> to vector<1x29x14xf32>
    %42 = vector.shape_cast %41 : vector<1x29x14xf32> to vector<29x14xf32>
    %43 = vector.extract_strided_slice %2 {offsets = [0, 5], sizes = [29, 1], strides = [1, 1]} : vector<32x6xf32> to vector<29x1xf32>
    %cst_14 = arith.constant dense<0.000000e+00> : vector<29x128xf32>
    %44 = tpu.matmul %42, %40, %cst_14 {dimension_numbers = #tpu.dot_dimension_numbers<[1], [0], [0], [1], [0, 0, 1, 1], [], []>} : vector<29x14xf32>, vector<14x128xf32>, vector<29x128xf32> -> vector<29x128xf32>
    %45 = vector.broadcast %43 : vector<29x1xf32> to vector<29x128xf32>
    %46 = arith.addf %44, %45 : vector<29x128xf32>
    %47 = math.tanh %46 : vector<29x128xf32>
    %c0_15 = arith.constant 0 : index
    %c0_16 = arith.constant 0 : index
    %48 = vector.load %arg4[%c0_15, %c0_16] : memref<29x128xf32, #tpu.memory_space<vmem>>, vector<29x128xf32>
    tpu.vector_store %arg4[%c0_15, %c0_16], %47 {strides = array<i32>} : memref<29x128xf32, #tpu.memory_space<vmem>>, vector<29x128xf32>,
    return
  }
  func.func @transform_0(%arg0: i32) -> (i32, i32) {
    %c0_i32 = arith.constant 0 : i32
    %c0_i32_0 = arith.constant 0 : i32
    return %c0_i32, %arg0 : i32, i32
  }
  func.func @transform_1(%arg0: i32) -> (i32, i32, i32) {
    %c0_i32 = arith.constant 0 : i32
    %c0_i32_0 = arith.constant 0 : i32
    %c0_i32_1 = arith.constant 0 : i32
    %c0_i32_2 = arith.constant 0 : i32
    return %c0_i32, %c0_i32_0, %c0_i32_1 : i32, i32, i32
  }
  func.func @transform_2(%arg0: i32) -> (i32, i32) {
    %c0_i32 = arith.constant 0 : i32
    %c0_i32_0 = arith.constant 0 : i32
    %c0_i32_1 = arith.constant 0 : i32
    return %c0_i32, %c0_i32_0 : i32, i32
  }
  func.func @transform_3(%arg0: i32) -> (i32, i32) {
    %c0_i32 = arith.constant 0 : i32
    %c0_i32_0 = arith.constant 0 : i32
    return %c0_i32, %arg0 : i32, i32
  }
}

</mosaic_0001>

<llo_original>
// kernel: tpu_custom_call.1
$region0: #{tpu_custom_call.1}
  #allocation0 [shape = 'u32[]', space=smem, size = 0x4, offset = 0x4, fixed_abs, tag = 'smem constant byte address 0x4 - core index']
  #allocation1 [shape = 'u32[72,128]{1,0:T(1,128)}', space=vmem, size = 0x9000, scoped, tag = 'internal scratch']
  %s0 = inlined_call_operand.hbm [shape: f32[29,256], index: 0, kind: input, shape index: {}]
  %s1 = inlined_call_operand.hbm [shape: f32[6,32,32], index: 1, kind: input, shape index: {}]
  %s2 = inlined_call_operand.vmem [shape: f32[32,6], index: 2, kind: input, shape index: {}]
  %s3 = inlined_call_operand.hbm [shape: f32[29,256], index: 3, kind: output, shape index: {}]
  %s4 = sld [smem:[#allocation0]]
  $region53: #{tpu_custom_call.1} parent=0
    _
  %s6 = ssub.s32 1, %s4
  %s7 = scalar_select 0, %s6, %s4
  $region1: #{tpu_custom_call.1} parent=0
    #allocation2 [shape = 'u8[32768]{0}', space=vmem, size = 0x8000, scoped, tag = 'input window, operand 0']
    #allocation3 [shape = 's32[2]{0}', space=sflag, size = 0x8, scoped, tag = 'scoped memory for tpu_custom_call.1']
    #allocation4 [shape = 's32[2]{0}', space=sflag, size = 0x8, scoped, tag = 'scoped memory for tpu_custom_call.1']
    #allocation5 [shape = 'u8[98304]{0}', space=vmem, size = 0x18000, scoped, tag = 'input window, operand 1, single buffered']
    #allocation6 [shape = 's32[1]{0}', space=sflag, size = 0x4, scoped, tag = 'scoped memory for tpu_custom_call.1']
    #allocation7 [shape = 'u8[32768]{0}', space=vmem, size = 0x8000, scoped, tag = 'output window, operand 0']
    %8 = vsyncpa [#allocation3], 0
    %s9 = scalar_lea.sflag [#allocation3], 1
    %10 = vsyncpa %s9, 0
    %11 = vsyncpa [#allocation6], 0
    %12 = vsyncpa [#allocation4], 0
    %s13 = scalar_lea.sflag [#allocation4], 1
    %14 = vsyncpa %s13, 0
    loop: start=0, step=1, limit=4
    $region2: #{tpu_custom_call.1} parent=1 // loop_pre_header
      _
    $region3: #{tpu_custom_call.1} parent=1 // loop_header
      %s16 = sphi 0, %s20
      %p17 = scmp.ge.s32.totalorder %s16, 4
      %s26 = sphi 0, %s28
      %s29 = sphi 0, %s26
      %s30 = sphi 0, %s29
      %s46 = sphi 0, %s30
      %s50 = sphi 0, %s50
      %s52 = sphi 0, %s50
      %s53 = sphi 0, %s52
      %s67 = sphi 0, %s53
      %s71 = sphi 0, %s71
      %s73 = sphi 0, %s71
      %s74 = sphi 0, %s73
      %s88 = sphi 0, %s74
      %s94 = sphi 0, %s96
      %s97 = sphi 0, %s94
      %s98 = sphi 0, %s97
      %s114 = sphi 0, %s98
    $region4: #{tpu_custom_call.1} parent=1 // loop_header_branch
      %19 = sbr.rel (%p17) target = $region8
    $region5: #{tpu_custom_call.1} parent=1 // loop_body
      %s21 = ssub.s32 %s16, 1
      %s22 = ssub.s32 %s16, 2
      %s23 = sadd.s32 %s16, 1
      %s24 = ssub.s32 %s16, %s23
      %p25 = scmp.eq.s32.totalorder %s24, 0
      %s27 = sadd.s32 %s26, 1
      %s28 = scalar_select %p25, %s26, %s27
      %p31 = pneg %p25
      %p32 = scmp.eq.s32.totalorder %s16, 1
      %p33 = por %p31, %p32
      %p34 = scmp.ne.s32.totalorder %s26, %s29
      %p35 = scmp.eq.s32.totalorder %s16, 0
      %p36 = por %p34, %p35
      %p37 = scmp.ne.s32.totalorder %s26, %s29
      %p38 = scmp.eq.s32.totalorder %s21, 1
      %p39 = por %p37, %p38
      %p40 = scmp.ne.s32.totalorder %s29, %s30
      %p41 = scmp.eq.s32.totalorder %s21, 0
      %p42 = por %p40, %p41
      %p43 = scmp.ne.s32.totalorder %s29, %s30
      %p44 = scmp.eq.s32.totalorder %s22, 1
      %p45 = por %p43, %p44
      %p47 = scmp.ne.s32.totalorder %s30, %s46
      %p48 = scmp.eq.s32.totalorder %s22, 0
      %p49 = por %p47, %p48
      %s51 = sadd.s32 %s50, 1
      %p54 = scmp.eq.s32.totalorder %s16, 1
      %p55 = scmp.ne.s32.totalorder %s50, %s52
      %p56 = scmp.eq.s32.totalorder %s16, 0
      %p57 = por %p55, %p56
      %p58 = scmp.ne.s32.totalorder %s50, %s52
      %p59 = scmp.eq.s32.totalorder %s21, 1
      %p60 = por %p58, %p59
      %p61 = scmp.ne.s32.totalorder %s52, %s53
      %p62 = scmp.eq.s32.totalorder %s21, 0
      %p63 = por %p61, %p62
      %p64 = scmp.ne.s32.totalorder %s52, %s53
      %p65 = scmp.eq.s32.totalorder %s22, 1
      %p66 = por %p64, %p65
      %p68 = scmp.ne.s32.totalorder %s53, %s67
      %p69 = scmp.eq.s32.totalorder %s22, 0
      %p70 = por %p68, %p69
      %s72 = sadd.s32 %s71, 1
      %p75 = scmp.eq.s32.totalorder %s16, 1
      %p76 = scmp.ne.s32.totalorder %s71, %s73
      %p77 = scmp.eq.s32.totalorder %s16, 0
      %p78 = por %p76, %p77
      %p79 = scmp.ne.s32.totalorder %s71, %s73
      %p80 = scmp.eq.s32.totalorder %s21, 1
      %p81 = por %p79, %p80
      %p82 = scmp.ne.s32.totalorder %s73, %s74
      %p83 = scmp.eq.s32.totalorder %s21, 0
      %p84 = por %p82, %p83
      %p85 = scmp.ne.s32.totalorder %s73, %s74
      %p86 = scmp.eq.s32.totalorder %s22, 1
      %p87 = por %p85, %p86
      %p89 = scmp.ne.s32.totalorder %s74, %s88
      %p90 = scmp.eq.s32.totalorder %s22, 0
      %p91 = por %p89, %p90
      %s92 = ssub.s32 %s16, %s23
      %p93 = scmp.eq.s32.totalorder %s92, 0
      %s95 = sadd.s32 %s94, 1
      %s96 = scalar_select %p93, %s94, %s95
      %p99 = pneg %p93
      %p100 = scmp.eq.s32.totalorder %s16, 1
      %p101 = por %p99, %p100
      %p102 = scmp.ne.s32.totalorder %s94, %s97
      %p103 = scmp.eq.s32.totalorder %s16, 0
      %p104 = por %p102, %p103
      %p105 = scmp.ne.s32.totalorder %s94, %s97
      %p106 = scmp.eq.s32.totalorder %s21, 1
      %p107 = por %p105, %p106
      %p108 = scmp.ne.s32.totalorder %s97, %s98
      %p109 = scmp.eq.s32.totalorder %s21, 0
      %p110 = por %p108, %p109
      %p111 = scmp.ne.s32.totalorder %s97, %s98
      %p112 = scmp.eq.s32.totalorder %s22, 1
      %p113 = por %p111, %p112
      %p115 = scmp.ne.s32.totalorder %s98, %s114
      %p116 = scmp.eq.s32.totalorder %s22, 0
      %p117 = por %p115, %p116
      %p118 = scmp.le.s32.totalorder 1, %s16
      %p119 = scmp.lt.s32.totalorder %s16, 3
      %p120 = pnand %p118, %p119
      %p121 = pneg %p120
      // Predicated region
      $region9: #{tpu_custom_call.1} parent=5 // pred_check
        _
      $region10: #{tpu_custom_call.1} parent=5 // pred_check_branch
        %123 = sbr.rel (%p120) target = $region12
      $region11: #{tpu_custom_call.1} parent=5 // pred_region
        %s124 = ssub.s32 %s16, 1
        // Predicated region
        $region13: #{tpu_custom_call.1} parent=11 // pred_check
          %p125 = pneg %p63
        $region14: #{tpu_custom_call.1} parent=11 // pred_check_branch
          %127 = sbr.rel (%p125) target = $region16
        $region15: #{tpu_custom_call.1} parent=11 // pred_region
          %129 = vsyncadd [#allocation6], 0
          %s130 = sshll.u32 %s1, 4
          %s131 = int_to_ptr.hbm [resolvable:$true] %s130
          %s132 = sshll.u32 [#allocation5], 4
          %s133 = int_to_ptr.vmem [resolvable:$true] %s132
          %138 = dma.hbm_to_vmem [thread:$0]  %s131, 3072, %s133, [#allocation6], 128, 128, 8
        $region16: #{tpu_custom_call.1} parent=11 // pred_fallthru
          _
        // Predicated region
        $region17: #{tpu_custom_call.1} parent=11 // pred_check
          %p139 = pneg %p84
        $region18: #{tpu_custom_call.1} parent=11 // pred_check_branch
          %141 = sbr.rel (%p139) target = $region20
        $region19: #{tpu_custom_call.1} parent=11 // pred_region
          _
        $region20: #{tpu_custom_call.1} parent=11 // pred_fallthru
          _
      $region12: #{tpu_custom_call.1} parent=5 // pred_fallthru
        _
      %p142 = scmp.lt.s32.totalorder %s16, 2
      // Predicated region
      $region21: #{tpu_custom_call.1} parent=5 // pred_check
        %p143 = pneg %p142
      $region22: #{tpu_custom_call.1} parent=5 // pred_check_branch
        %145 = sbr.rel (%p143) target = $region24
      $region23: #{tpu_custom_call.1} parent=5 // pred_region
        // Predicated region
        $region25: #{tpu_custom_call.1} parent=23 // pred_check
          %p146 = pneg %p36
        $region26: #{tpu_custom_call.1} parent=23 // pred_check_branch
          %148 = sbr.rel (%p146) target = $region28
        $region27: #{tpu_custom_call.1} parent=23 // pred_region
          %s149 = sand.u32 %s26, 1
          %s150 = scalar_lea.sflag [#allocation3], %s149
          %s151 = sand.u32 %s26, 1
          %s152 = smul.addr %s151, 32
          %s153 = scalar_lea.vmem [#allocation2], %s152
          %155 = vsyncadd %s150, 0
          %s156 = smul.addr %s16, 8
          %s157 = scalar_lea.hbm %s0, %s156
          %s158 = sshll.u32 %s157, 4
          %s159 = int_to_ptr.hbm [resolvable:$true] %s158
          %s160 = sshll.u32 %s153, 4
          %s161 = int_to_ptr.vmem [resolvable:$true] %s160
          %166 = dma.hbm_to_vmem [thread:$0]  %s159, 512, %s161, %s150, 256, 128, 8
        $region28: #{tpu_custom_call.1} parent=23 // pred_fallthru
          _
      $region24: #{tpu_custom_call.1} parent=5 // pred_fallthru
        _
      %p167 = scmp.le.s32.totalorder 1, %s16
      %p168 = scmp.lt.s32.totalorder %s16, 3
      %p169 = pnand %p167, %p168
      %p170 = pneg %p169
      // Predicated region
      $region29: #{tpu_custom_call.1} parent=5 // pred_check
        _
      $region30: #{tpu_custom_call.1} parent=5 // pred_check_branch
        %172 = sbr.rel (%p169) target = $region32
      $region31: #{tpu_custom_call.1} parent=5 // pred_region
        %s173 = ssub.s32 %s16, 1
        %s174 = sand.u32 %s29, 1
        %s175 = scalar_lea.sflag [#allocation3], %s174
        %s176 = sand.u32 %s29, 1
        %s177 = smul.addr %s176, 32
        %s178 = scalar_lea.vmem [#allocation2], %s177
        // Predicated region
        $region33: #{tpu_custom_call.1} parent=31 // pred_check
          %p179 = pneg %p42
        $region34: #{tpu_custom_call.1} parent=31 // pred_check_branch
          %181 = sbr.rel (%p179) target = $region36
        $region35: #{tpu_custom_call.1} parent=31 // pred_region
          %183 = dma.done %s175, 512
        $region36: #{tpu_custom_call.1} parent=31 // pred_fallthru
          _
        // Predicated region
        $region37: #{tpu_custom_call.1} parent=31 // pred_check
          %p184 = pneg %p63
        $region38: #{tpu_custom_call.1} parent=31 // pred_check_branch
          %186 = sbr.rel (%p184) target = $region40
        $region39: #{tpu_custom_call.1} parent=31 // pred_region
          %188 = dma.done [#allocation6], 3072
        $region40: #{tpu_custom_call.1} parent=31 // pred_fallthru
          _
        %s189 = sand.u32 %s29, 1
        %s190 = scalar_lea.sflag [#allocation3], %s189
        %s191 = sand.u32 %s29, 1
        %s192 = smul.addr %s191, 32
        %s193 = scalar_lea.vmem [#allocation2], %s192
        %p194 = pneg %p42
        %p195 = pneg %p39
        %p196 = pneg %p63
        %p197 = pneg %p60
        %p198 = pneg %p84
        %p199 = pneg %p81
        %p200 = pneg %p110
        %p201 = pneg %p107
        %s202 = sand.u32 %s97, 1
        %s203 = scalar_lea.sflag [#allocation4], %s202
        %s204 = sand.u32 %s97, 1
        %s205 = smul.addr %s204, 32
        %s206 = scalar_lea.vmem [#allocation7], %s205
        %v207 = vld [vmem:[%s178] sm:$0xff]
        %v208 = vld [vmem:[%s178 + $0x8] sm:$0xff]
        %v209 = vld [vmem:[%s178 + $0x10] sm:$0xff]
        %v210 = vld [vmem:[%s178 + $0x18] sm:$0x1f]
        %v211 = vld [vmem:[#allocation5] sm:$0xff]
        %v212 = vld [vmem:[#allocation5 + $0x8] sm:$0xff]
        %v213 = vld [vmem:[#allocation5 + $0x20] sm:$0xff]
        %v214 = vld [vmem:[#allocation5 + $0x40] sm:$0xff]
        %v215 = vld [vmem:[#allocation5 + $0x60] sm:$0xff]
        %v216 = vld [vmem:[#allocation5 + $0x80] sm:$0xff]
        %v217 = vld [vmem:[#allocation5 + $0x88] sm:$0xff]
        %v218 = vld [vmem:[#allocation5 + $0xa0] sm:$0xff]
        %v219 = vld [vmem:[#allocation5 + $0xa8] sm:$0xff]
        %v220 = vld [vmem:[#allocation5 + $0xb0] sm:$0xff]
        %v221 = vld [vmem:[#allocation5 + $0xb8] sm:$0xff]
        %v222 = vld [vmem:[%s2] sm:$0xff]
        %v223 = vld [vmem:[%s2 + $0x8] sm:$0xff]
        %v224 = vld [vmem:[%s2 + $0x10] sm:$0xff]
        %v225 = vld [vmem:[%s2 + $0x18] sm:$0xff]
        %227 = vset.pattern.permute.xlu0 0
        %228 = vperm.xlu0 %227, %v222
        %v229 = vpop.permute.xlu0 %228
        %232 = vset.pattern.permute.xlu0 0
        %233 = vperm.xlu0 %232, %v223
        %v234 = vpop.permute.xlu0 %233
        %vm236 = vcmask 236544
        %v238 = vsel %vm236, %v211, 0
        %v241 = vsel %vm236, %v212, 0
        %vm243 = vcmask 1044480
        %v245 = vsel %vm243, %v210, 0
        %247 = vmatpush.msra.mxu0 0.0
        %248 = vmatpush.msra.mxu0 0.0
        %249 = vmatpush.msra.mxu0 0.0
        %250 = vmatpush.msra.mxu0 0.0
        %251 = vmatpush.msra.mxu0 0.0
        %252 = vmatpush.msra.mxu0 0.0
        %253 = vmatpush.msra.mxu0 0.0
        %254 = vmatpush.msra.mxu0 0.0
        %255 = vmatpush.msra.mxu0 0.0
        %256 = vmatpush.msra.mxu0 0.0
        %257 = vmatpush.msra.mxu0 0.0
        %258 = vmatpush.msra.mxu0 0.0
        %259 = vmatpush.msra.mxu0 %v245
        %260 = vmatpush.msra.mxu0 %v209
        %261 = vmatpush.msra.mxu0 %v208
        %262 = vmatpush.msra.mxu0 %v207
        %263 = vmatmul.f32.gmra.mxu0 %v238
        %v264 = vpop.f32.mrf.mxu0
        %v265 = vadd.f32 %v229, %v264
        %266 = vmatmul.f32.gmra.mxu0 %v241
        %v267 = vpop.f32.mrf.mxu0
        %v268 = vadd.f32 %v234, %v267
        %269 = vdwg.mxu0
        %v270 = vmax.f32 %v265, 0.0
        %v271 = vmax.f32 %v268, 0.0
        %272 = vset.pattern.permute.xlu0 1
        %273 = vperm.xlu0 %272, %v222
        %v274 = vpop.permute.xlu0 %273
        %vm276 = vcmask 113664
        %v278 = vsel %vm276, %v213, 0
        %vm280 = vcmask 1045504
        %v282 = vsel %vm280, %v271, 0
        %284 = vmatpush.msra.mxu0 0.0
        %285 = vmatpush.msra.mxu0 0.0
        %286 = vmatpush.msra.mxu0 0.0
        %287 = vmatpush.msra.mxu0 0.0
        %288 = vmatpush.msra.mxu0 0.0
        %289 = vmatpush.msra.mxu0 0.0
        %290 = vmatpush.msra.mxu0 0.0
        %291 = vmatpush.msra.mxu0 0.0
        %292 = vmatpush.msra.mxu0 0.0
        %293 = vmatpush.msra.mxu0 0.0
        %294 = vmatpush.msra.mxu0 0.0
        %295 = vmatpush.msra.mxu0 0.0
        %296 = vmatpush.msra.mxu0 0.0
        %297 = vmatpush.msra.mxu0 0.0
        %298 = vmatpush.msra.mxu0 %v282
        %299 = vmatpush.msra.mxu0 %v270
        %300 = vmatmul.f32.gmra.mxu0 %v278
        %v301 = vpop.f32.mrf.mxu0
        %v302 = vadd.f32 %v274, %v301
        %303 = vdwg.mxu0
        %v304 = vmax.f32 %v302, 0.0
        %305 = vset.pattern.permute.xlu0 2
        %306 = vperm.xlu0 %305, %v222
        %v307 = vpop.permute.xlu0 %306
        %vm309 = vcmask 56320
        %v311 = vsel %vm309, %v214, 0
        %vm313 = vcmask 1046528
        %v315 = vsel %vm313, %v304, 0
        %317 = vmatpush.msra.mxu0 0.0
        %318 = vmatpush.msra.mxu0 0.0
        %319 = vmatpush.msra.mxu0 0.0
        %320 = vmatpush.msra.mxu0 0.0
        %321 = vmatpush.msra.mxu0 0.0
        %322 = vmatpush.msra.mxu0 0.0
        %323 = vmatpush.msra.mxu0 0.0
        %324 = vmatpush.msra.mxu0 0.0
        %325 = vmatpush.msra.mxu0 0.0
        %326 = vmatpush.msra.mxu0 0.0
        %327 = vmatpush.msra.mxu0 0.0
        %328 = vmatpush.msra.mxu0 0.0
        %329 = vmatpush.msra.mxu0 0.0
        %330 = vmatpush.msra.mxu0 0.0
        %331 = vmatpush.msra.mxu0 0.0
        %332 = vmatpush.msra.mxu0 %v315
        %333 = vmatmul.f32.gmra.mxu0 %v311
        %v334 = vpop.f32.mrf.mxu0
        %v335 = vadd.f32 %v307, %v334
        %336 = vdwg.mxu0
        %337 = vset.pattern.permute.xlu0 3
        %338 = vperm.xlu0 %337, %v222
        %v339 = vpop.permute.xlu0 %338
        %vm341 = vcmask 23552
        %v343 = vsel %vm341, %v215, 0
        %vm345 = vcmask 1042432
        %v347 = vsel %vm345, %v335, 0
        %349 = vmatpush.msra.mxu0 0.0
        %350 = vmatpush.msra.mxu0 0.0
        %351 = vmatpush.msra.mxu0 0.0
        %352 = vmatpush.msra.mxu0 0.0
        %353 = vmatpush.msra.mxu0 0.0
        %354 = vmatpush.msra.mxu0 0.0
        %355 = vmatpush.msra.mxu0 0.0
        %356 = vmatpush.msra.mxu0 0.0
        %357 = vmatpush.msra.mxu0 0.0
        %358 = vmatpush.msra.mxu0 0.0
        %359 = vmatpush.msra.mxu0 0.0
        %360 = vmatpush.msra.mxu0 0.0
        %361 = vmatpush.msra.mxu0 0.0
        %362 = vmatpush.msra.mxu0 0.0
        %363 = vmatpush.msra.mxu0 0.0
        %364 = vmatpush.msra.mxu0 %v347
        %365 = vmatmul.f32.gmra.mxu0 %v343
        %v366 = vpop.f32.mrf.mxu0
        %v367 = vadd.f32 %v339, %v366
        %368 = vdwg.mxu0
        %v369 = vmax.f32 %v367, 0.0
        %370 = vset.pattern.permute.xlu0 4
        %371 = vperm.xlu0 %370, %v222
        %v372 = vpop.permute.xlu0 %371
        %374 = vset.pattern.permute.xlu0 4
        %375 = vperm.xlu0 %374, %v223
        %v376 = vpop.permute.xlu0 %375
        %v379 = vsel %vm309, %v216, 0
        %v382 = vsel %vm309, %v217, 0
        %v385 = vsel %vm313, %v369, 0
        %387 = vmatpush.msra.mxu0 0.0
        %388 = vmatpush.msra.mxu0 0.0
        %389 = vmatpush.msra.mxu0 0.0
        %390 = vmatpush.msra.mxu0 0.0
        %391 = vmatpush.msra.mxu0 0.0
        %392 = vmatpush.msra.mxu0 0.0
        %393 = vmatpush.msra.mxu0 0.0
        %394 = vmatpush.msra.mxu0 0.0
        %395 = vmatpush.msra.mxu0 0.0
        %396 = vmatpush.msra.mxu0 0.0
        %397 = vmatpush.msra.mxu0 0.0
        %398 = vmatpush.msra.mxu0 0.0
        %399 = vmatpush.msra.mxu0 0.0
        %400 = vmatpush.msra.mxu0 0.0
        %401 = vmatpush.msra.mxu0 0.0
        %402 = vmatpush.msra.mxu0 %v385
        %403 = vmatmul.f32.gmra.mxu0 %v379
        %v404 = vpop.f32.mrf.mxu0
        %v405 = vadd.f32 %v372, %v404
        %406 = vmatmul.f32.gmra.mxu0 %v382
        %v407 = vpop.f32.mrf.mxu0
        %v408 = vadd.f32 %v376, %v407
        %409 = vdwg.mxu0
        %v410 = vmax.f32 %v405, 0.0
        %v411 = vmax.f32 %v408, 0.0
        %412 = vset.pattern.permute.xlu0 5
        %413 = vperm.xlu0 %412, %v222
        %v414 = vpop.permute.xlu0 %413
        %416 = vset.pattern.permute.xlu0 5
        %417 = vperm.xlu0 %416, %v223
        %v418 = vpop.permute.xlu0 %417
        %421 = vset.pattern.permute.xlu0 5
        %422 = vperm.xlu0 %421, %v224
        %v423 = vpop.permute.xlu0 %422
        %426 = vset.pattern.permute.xlu0 5
        %427 = vperm.xlu0 %426, %v225
        %v428 = vpop.permute.xlu0 %427
        %v431 = vsel %vm276, %v218, 0
        %v434 = vsel %vm276, %v219, 0
        %v437 = vsel %vm276, %v220, 0
        %v440 = vsel %vm276, %v221, 0
        %v443 = vsel %vm280, %v411, 0
        %445 = vmatpush.msra.mxu0 0.0
        %446 = vmatpush.msra.mxu0 0.0
        %447 = vmatpush.msra.mxu0 0.0
        %448 = vmatpush.msra.mxu0 0.0
        %449 = vmatpush.msra.mxu0 0.0
        %450 = vmatpush.msra.mxu0 0.0
        %451 = vmatpush.msra.mxu0 0.0
        %452 = vmatpush.msra.mxu0 0.0
        %453 = vmatpush.msra.mxu0 0.0
        %454 = vmatpush.msra.mxu0 0.0
        %455 = vmatpush.msra.mxu0 0.0
        %456 = vmatpush.msra.mxu0 0.0
        %457 = vmatpush.msra.mxu0 0.0
        %458 = vmatpush.msra.mxu0 0.0
        %459 = vmatpush.msra.mxu0 %v443
        %460 = vmatpush.msra.mxu0 %v410
        %461 = vmatmul.f32.gmra.mxu0 %v431
        %v462 = vpop.f32.mrf.mxu0
        %v463 = vadd.f32 %v414, %v462
        %464 = vmatmul.f32.gmra.mxu0 %v434
        %v465 = vpop.f32.mrf.mxu0
        %v466 = vadd.f32 %v418, %v465
        %467 = vmatmul.f32.gmra.mxu0 %v437
        %v468 = vpop.f32.mrf.mxu0
        %v469 = vadd.f32 %v423, %v468
        %470 = vmatmul.f32.gmra.mxu0 %v440
        %v471 = vpop.f32.mrf.mxu0
        %v472 = vadd.f32 %v428, %v471
        %473 = vdwg.mxu0
        %v474 = vtanh.pop %v463
        %v475 = vtanh.pop %v466
        %v476 = vtanh.pop %v469
        %v477 = vtanh.pop %v472
        %478 = vst [vmem:[%s206] sm:$0xff] %v474
        %479 = vst [vmem:[%s206 + $0x8] sm:$0xff] %v475
        %480 = vst [vmem:[%s206 + $0x10] sm:$0xff] %v476
        %481 = vst [vmem:[%s206 + $0x18] sm:$0x1f] %v477
        %s482 = sand.u32 %s97, 1
        %s483 = scalar_lea.sflag [#allocation4], %s482
        %s484 = sand.u32 %s97, 1
        %s485 = smul.addr %s484, 32
        %s486 = scalar_lea.vmem [#allocation7], %s485
        // Predicated region
        $region41: #{tpu_custom_call.1} parent=31 // pred_check
          %p487 = pneg %p107
        $region42: #{tpu_custom_call.1} parent=31 // pred_check_branch
          %489 = sbr.rel (%p487) target = $region44
        $region43: #{tpu_custom_call.1} parent=31 // pred_region
          %491 = vsyncadd %s483, 0
          %s492 = smul.addr %s21, 8
          %s493 = scalar_lea.hbm %s3, %s492
          %s494 = sshll.u32 %s486, 4
          %s495 = int_to_ptr.vmem [resolvable:$true] %s494
          %s496 = sshll.u32 %s493, 4
          %s497 = int_to_ptr.hbm [resolvable:$true] %s496
          %502 = dma.vmem_to_hbm [thread:$0]  %s495, 512, %s497, %s483, 128, 256, 8
        $region44: #{tpu_custom_call.1} parent=31 // pred_fallthru
          _
      $region32: #{tpu_custom_call.1} parent=5 // pred_fallthru
        _
      %p503 = scmp.le.s32.totalorder 2, %s16
      // Predicated region
      $region45: #{tpu_custom_call.1} parent=5 // pred_check
        %p504 = pneg %p503
      $region46: #{tpu_custom_call.1} parent=5 // pred_check_branch
        %506 = sbr.rel (%p504) target = $region48
      $region47: #{tpu_custom_call.1} parent=5 // pred_region
        %s507 = ssub.s32 %s16, 2
        // Predicated region
        $region49: #{tpu_custom_call.1} parent=47 // pred_check
          %p508 = pneg %p113
        $region50: #{tpu_custom_call.1} parent=47 // pred_check_branch
          %510 = sbr.rel (%p508) target = $region52
        $region51: #{tpu_custom_call.1} parent=47 // pred_region
          %s511 = sand.u32 %s98, 1
          %s512 = scalar_lea.sflag [#allocation4], %s511
          %s513 = sand.u32 %s98, 1
          %s514 = smul.addr %s513, 32
          %s515 = scalar_lea.vmem [#allocation7], %s514
          %517 = dma.done %s512, 512
        $region52: #{tpu_custom_call.1} parent=47 // pred_fallthru
          _
      $region48: #{tpu_custom_call.1} parent=5 // pred_fallthru
        _
    $region6: #{tpu_custom_call.1} parent=1 // loop_footer
      %s20 = sadd.s32 1, %s16
    $region7: #{tpu_custom_call.1} parent=1 // loop_footer_branch
      %15 = sbr.rel target = $region3
    $region8: #{tpu_custom_call.1} parent=1 // loop_exit
      _
    %518 = vsyncpa [#allocation3], 1
    %s519 = scalar_lea.sflag [#allocation3], 1
    %520 = vsyncpa %s519, 1
    %521 = vsyncpa [#allocation6], 1
    %522 = vsyncpa [#allocation4], 1
    %s523 = scalar_lea.sflag [#allocation4], 1
    %524 = vsyncpa %s523, 1

</llo_original>
